<compile_context>
chip_gen: v7x
topology: tpu7x:2x2x1
jax: 0.10.0
libtpu: 0.0.40
codegen_flags: <defaults>
</compile_context>

<pallas_src>
import functools

import jax
import jax.numpy as jnp
from jax.experimental import pallas as pl
from jax.experimental.pallas import tpu as pltpu

BN_EPS = 1e-5


def _round_up(x, m):
    return ((x + m - 1) // m) * m


def _full_spec(shape):
    zeros = (0,) * len(shape)
    return pl.BlockSpec(shape, lambda i, _z=zeros: _z)


# ----------------------------------------------------------------------------
# MelResNet kernel: im2col-matmul conv_in -> BN -> ReLU -> ResBlocks -> conv_out
# All matmuls run bf16 x bf16 -> f32 on the MXU; BN/ReLU stay f32.
# ----------------------------------------------------------------------------
def _bn(x2d, p):
    # p: (4, C) = [gamma, beta, running_mean, running_var]
    gamma = p[0:1, :]
    beta = p[1:2, :]
    mean = p[2:3, :]
    var = p[3:4, :]
    return (x2d - mean) * (gamma * jax.lax.rsqrt(var + BN_EPS)) + beta


def melresnet_kernel(x_ref, win_ref, bnin_ref, w1s_ref, bn1s_ref, w2s_ref,
                     bn2s_ref, wout_ref, bout_ref, o_ref):
    # x_ref: (TM, Kp) bf16 im2col slab (K = 5*Cin padded to a multiple of 128).
    h = jnp.dot(x_ref[...], win_ref[...], preferred_element_type=jnp.float32)
    h = jnp.maximum(_bn(h, bnin_ref[...]), 0.0)

    # ResBlocks: conv1(1x1) -> BN -> ReLU -> conv2(1x1) -> BN -> +residual
    for r in range(w1s_ref.shape[0]):
        y = jnp.dot(h.astype(jnp.bfloat16), w1s_ref[r],
                    preferred_element_type=jnp.float32)
        y = jnp.maximum(_bn(y, bn1s_ref[r]), 0.0)
        y = jnp.dot(y.astype(jnp.bfloat16), w2s_ref[r],
                    preferred_element_type=jnp.float32)
        y = _bn(y, bn2s_ref[r])
        h = h + y

    # conv_out: kernel_size=1, with bias (lane-dense padded output columns)
    out = jnp.dot(h.astype(jnp.bfloat16), wout_ref[...],
                  preferred_element_type=jnp.float32)
    o_ref[...] = out + bout_ref[...]


def melresnet_pallas(m_btc, params):
    B, T, Cin = m_btc.shape
    Tout = T - 4
    Cd = params["w_in"].shape[2]
    Rout = params["w_out"].shape[1]
    R = params["w1s"].shape[0]

    # im2col in the wrapper (glue): (B, Tout, 5*Cin) -> (B*Tout, 5*Cin)
    cols = [m_btc[:, k:k + Tout, :] for k in range(5)]
    x = jnp.concatenate(cols, axis=-1).reshape(B * Tout, 5 * Cin)

    K0 = 5 * Cin
    Kp = _round_up(K0, 128)
    Cdp = _round_up(Cd, 128)
    Rp = _round_up(Rout, 128)
    M = B * Tout
    TM = min(_round_up(M, 16), 256)
    Mp = _round_up(M, TM)

    x = jnp.pad(x, ((0, Mp - M), (0, Kp - K0))).astype(jnp.bfloat16)

    w_in = jnp.pad(params["w_in"].reshape(K0, Cd),
                   ((0, Kp - K0), (0, Cdp - Cd))).astype(jnp.bfloat16)
    bn_in = jnp.pad(params["bn_in"], ((0, 0), (0, Cdp - Cd)))
    w1s = jnp.pad(params["w1s"],
                  ((0, 0), (0, Cdp - Cd), (0, Cdp - Cd))).astype(jnp.bfloat16)
    w2s = jnp.pad(params["w2s"],
                  ((0, 0), (0, Cdp - Cd), (0, Cdp - Cd))).astype(jnp.bfloat16)
    bn1s = jnp.pad(params["bn1s"], ((0, 0), (0, 0), (0, Cdp - Cd)))
    bn2s = jnp.pad(params["bn2s"], ((0, 0), (0, 0), (0, Cdp - Cd)))
    w_out = jnp.pad(params["w_out"],
                    ((0, Cdp - Cd), (0, Rp - Rout))).astype(jnp.bfloat16)
    b_out = jnp.pad(params["b_out"], ((0, 0), (0, Rp - Rout)))

    out = pl.pallas_call(
        melresnet_kernel,
        out_shape=jax.ShapeDtypeStruct((Mp, Rp), jnp.float32),
        grid=(Mp // TM,),
        in_specs=[
            pl.BlockSpec((TM, Kp), lambda i: (i, 0)),
            _full_spec((Kp, Cdp)),
            _full_spec((4, Cdp)),
            _full_spec((R, Cdp, Cdp)),
            _full_spec((R, 4, Cdp)),
            _full_spec((R, Cdp, Cdp)),
            _full_spec((R, 4, Cdp)),
            _full_spec((Cdp, Rp)),
            _full_spec((1, Rp)),
        ],
        out_specs=pl.BlockSpec((TM, Rp), lambda i: (i, 0)),
        compiler_params=pltpu.CompilerParams(
            dimension_semantics=("parallel",),
            vmem_limit_bytes=32 * 1024 * 1024),
    )(x, w_in, bn_in, w1s, bn1s, w2s, bn2s, w_out, b_out)

    return out[:M, :Rout].reshape(B, Tout, Rout)


# ----------------------------------------------------------------------------
# Fused Stretch2d(scale,1) + Conv2d(1,1,(1,2s+1),pad=(0,s), weight=1/(2s+1)):
# out[:, a*s + r] = ((s-r)*x[:,a-1] + s*x[:,a] + (r+1)*x[:,a+1]) / (2s+1)
# (out-of-range x treated as 0).  Reads the UN-stretched x; writes phase-major
# slabs out_pm[r, :, a] = out[:, a*s + r] so every store is lane-dense.
# ----------------------------------------------------------------------------
def stretch_avg_kernel(xm_ref, xc_ref, xp_ref, o_ref, *, scale):
    inv_w = 1.0 / float(2 * scale + 1)
    xm = xm_ref[...]                     # x shifted right: xm[:, a] = x[:, a-1]
    xp = xp_ref[...]                     # x shifted left:  xp[:, a] = x[:, a+1]
    center = (scale * inv_w) * xc_ref[...]
    for r in range(scale):
        o_ref[r, :, :] = (center
                          + ((scale - r) * inv_w) * xm
                          + ((r + 1) * inv_w) * xp)


def stretch_avg_pallas(x, scale):
    rows, L = x.shape
    RT = min(_round_up(rows, 8), 64)
    rows_pad = _round_up(rows, RT)
    LT = min(_round_up(L, 128), 1024)
    L_pad = _round_up(L, LT)

    # Zero-padded center / left-shift / right-shift views (wrapper glue; the
    # zero padding also supplies the conv's boundary zeros).
    xc = jnp.pad(x, ((0, rows_pad - rows), (0, L_pad - L)))
    xm = jnp.pad(x, ((0, rows_pad - rows), (1, L_pad - L)))[:, :L_pad]
    xp = jnp.pad(x[:, 1:], ((0, rows_pad - rows), (0, L_pad - L + 1)))

    out_pm = pl.pallas_call(
        functools.partial(stretch_avg_kernel, scale=scale),
        out_shape=jax.ShapeDtypeStruct((scale, rows_pad, L_pad), jnp.float32),
        grid=(rows_pad // RT, L_pad // LT),
        in_specs=[
            pl.BlockSpec((RT, LT), lambda i, j: (i, j)),
            pl.BlockSpec((RT, LT), lambda i, j: (i, j)),
            pl.BlockSpec((RT, LT), lambda i, j: (i, j)),
        ],
        out_specs=pl.BlockSpec((scale, RT, LT), lambda i, j: (0, i, j)),
        compiler_params=pltpu.CompilerParams(
            dimension_semantics=("parallel", "parallel"),
            vmem_limit_bytes=32 * 1024 * 1024),
    )(xm, xc, xp)

    # Interleave phases (layout plumbing, done by XLA in the wrapper).
    out = out_pm[:, :rows, :L]                        # (scale, rows, L)
    out = jnp.transpose(out, (1, 2, 0)).reshape(rows, L * scale)
    return out


# ----------------------------------------------------------------------------
# Full UpsampleNetwork forward
# ----------------------------------------------------------------------------
def upsample_network_forward(m, params, upsample_scales, pad):
    # m: (B, feat_dims, T)  -- NCW, matching the PyTorch Conv1d input layout
    B, Cf, T = m.shape
    total = 1
    for s in upsample_scales:
        total *= s
    indent = pad * total

    # --- aux path: MelResNet (Pallas) + Stretch2d(total,1) + transpose ---
    m_btc = jnp.transpose(m, (0, 2, 1))                 # (B, T, feat_dims)
    aux = melresnet_pallas(m_btc, params)               # (B, T-4, res_out_dims)
    aux = jnp.repeat(aux, total, axis=1)                # stretch along time (glue)

    # --- m path: fused Stretch2d(s,1)+Conv per scale (Pallas) ---
    x = m.reshape(B * Cf, T).astype(jnp.float32)
    for s in upsample_scales:
        x = stretch_avg_pallas(x, s)
    m_up = x.reshape(B, Cf, T * total)
    m_out = jnp.transpose(m_up[:, :, indent:-indent], (0, 2, 1))
    return m_out, aux


# ----------------------------------------------------------------------------
# Pure-JAX reference (same math incl. bf16 matmul operands) for correctness
# ----------------------------------------------------------------------------
def _bn_ref(x, p):
    return (x - p[2]) * (p[0] * jax.lax.rsqrt(p[3] + BN_EPS)) + p[1]


def _bf16_mm(a, w):
    return jnp.einsum("btc,cd->btd", a.astype(jnp.bfloat16),
                      w.astype(jnp.bfloat16),
                      preferred_element_type=jnp.float32)


def ref_forward(m, params, upsample_scales, pad):
    B, Cf, T = m.shape
    total = 1
    for s in upsample_scales:
        total *= s
    indent = pad * total
    Tout = T - 4
    Cd = params["w_in"].shape[2]

    x = jnp.transpose(m, (0, 2, 1))
    h = jnp.zeros((B, Tout, Cd), jnp.float32)
    for k in range(5):
        h = h + _bf16_mm(x[:, k:k + Tout, :], params["w_in"][k])
    h = jnp.maximum(_bn_ref(h, params["bn_in"]), 0.0)
    for r in range(params["w1s"].shape[0]):
        y = _bf16_mm(h, params["w1s"][r])
        y = jnp.maximum(_bn_ref(y, params["bn1s"][r]), 0.0)
        y = _bf16_mm(y, params["w2s"][r])
        y = _bn_ref(y, params["bn2s"][r])
        h = h + y
    aux = _bf16_mm(h, params["w_out"]) + params["b_out"]
    aux = jnp.repeat(aux, total, axis=1)

    xm = m.reshape(B * Cf, T)
    for s in upsample_scales:
        xm = jnp.repeat(xm, s, axis=-1)
        L = xm.shape[1]
        xp = jnp.pad(xm, ((0, 0), (s, s)))
        w = 2 * s + 1
        acc = jnp.zeros_like(xm)
        for k in range(w):
            acc = acc + xp[:, k:k + L]
        xm = acc / w
    m_up = xm.reshape(B, Cf, T * total)
    m_out = jnp.transpose(m_up[:, :, indent:-indent], (0, 2, 1))
    return m_out, aux


# ----------------------------------------------------------------------------
# Deterministic parameter init (shapes from the PyTorch __init__)
# ----------------------------------------------------------------------------
def init_params(key, feat_dims, compute_dims, res_out_dims, res_blocks):
    keys = jax.random.split(key, 10)

    def bn_params(k, c):
        k1, k2, k3, k4 = jax.random.split(k, 4)
        gamma = 1.0 + 0.1 * jax.random.normal(k1, (1, c))
        beta = 0.1 * jax.random.normal(k2, (1, c))
        mean = 0.1 * jax.random.normal(k3, (1, c))
        var = 0.5 + jnp.abs(jax.random.normal(k4, (1, c)))
        return jnp.concatenate([gamma, beta, mean, var], 0).astype(jnp.float32)

    bn1_keys = jax.random.split(keys[5], res_blocks)
    bn2_keys = jax.random.split(keys[6], res_blocks)
    params = {
        "w_in": (0.2 * jax.random.normal(
            keys[0], (5, feat_dims, compute_dims))).astype(jnp.float32),
        "bn_in": bn_params(keys[1], compute_dims),
        "w1s": (0.2 * jax.random.normal(
            keys[2], (res_blocks, compute_dims, compute_dims))).astype(jnp.float32),
        "w2s": (0.2 * jax.random.normal(
            keys[3], (res_blocks, compute_dims, compute_dims))).astype(jnp.float32),
        "bn1s": jnp.stack([bn_params(k, compute_dims) for k in bn1_keys]),
        "bn2s": jnp.stack([bn_params(k, compute_dims) for k in bn2_keys]),
        "w_out": (0.2 * jax.random.normal(
            keys[4], (compute_dims, res_out_dims))).astype(jnp.float32),
        "b_out": (0.1 * jax.random.normal(
            keys[7], (1, res_out_dims))).astype(jnp.float32),
    }
    return params


if __name__ == "__main__":
    B, feat_dims, T = 2, 16, 16
    compute_dims, res_out_dims, res_blocks = 32, 32, 2
    upsample_scales = (2, 2)
    pad = 2
    total = 4

    key = jax.random.PRNGKey(0)
    k_m, k_p = jax.random.split(key)
    m = jax.random.normal(k_m, (B, feat_dims, T), dtype=jnp.float32)
    params = init_params(k_p, feat_dims, compute_dims, res_out_dims, res_blocks)

    fwd = jax.jit(functools.partial(upsample_network_forward,
                                    upsample_scales=upsample_scales, pad=pad))
    m_out, aux_out = fwd(m, params)
    jax.block_until_ready((m_out, aux_out))

    # shape checks (match PyTorch module semantics)
    assert m_out.shape == (B, T * total - 2 * pad * total, feat_dims), m_out.shape
    assert aux_out.shape == (B, (T - 4) * total, res_out_dims), aux_out.shape

    # numerical check vs pure-JAX reference of the same math
    m_ref, aux_ref = ref_forward(m, params, upsample_scales, pad)
    assert jnp.allclose(m_out, m_ref, atol=1e-4, rtol=1e-4), (
        float(jnp.max(jnp.abs(m_out - m_ref))))
    assert jnp.allclose(aux_out, aux_ref, atol=2e-3, rtol=2e-3), (
        float(jnp.max(jnp.abs(aux_out - aux_ref))))

    print("KERNEL_OK")
</pallas_src>

<mosaic_0001>
module attributes {stable_mosaic.version = 11 : i64} {
  func.func @melresnet_kernel(%arg0: i32, %arg1: memref<32x128xbf16, #tpu.memory_space<vmem>>, %arg2: memref<128x128xbf16, #tpu.memory_space<vmem>>, %arg3: memref<4x128xf32, #tpu.memory_space<vmem>>, %arg4: memref<2x128x128xbf16, #tpu.memory_space<vmem>>, %arg5: memref<2x4x128xf32, #tpu.memory_space<vmem>>, %arg6: memref<2x128x128xbf16, #tpu.memory_space<vmem>>, %arg7: memref<2x4x128xf32, #tpu.memory_space<vmem>>, %arg8: memref<128x128xbf16, #tpu.memory_space<vmem>>, %arg9: memref<1x128xf32, #tpu.memory_space<vmem>>, %arg10: memref<32x128xf32, #tpu.memory_space<vmem>>) attributes {dimension_semantics = [#tpu.dimension_semantics<parallel>], iteration_bounds = array<i64: 1>, scalar_prefetch = 0 : i64, scratch_operands = 0 : i64, tpu.core_type = #tpu.core_type<tc>, window_params = [{transform_indices = @transform_0, window_bounds = array<i64: 32, 128>}, {pipeline_mode = #tpu.pipeline_mode<synchronous>, transform_indices = @transform_1, window_bounds = array<i64: 128, 128>}, {pipeline_mode = #tpu.pipeline_mode<synchronous>, transform_indices = @transform_2, window_bounds = array<i64: 4, 128>}, {pipeline_mode = #tpu.pipeline_mode<synchronous>, transform_indices = @transform_3, window_bounds = array<i64: 2, 128, 128>}, {pipeline_mode = #tpu.pipeline_mode<synchronous>, transform_indices = @transform_4, window_bounds = array<i64: 2, 4, 128>}, {pipeline_mode = #tpu.pipeline_mode<synchronous>, transform_indices = @transform_5, window_bounds = array<i64: 2, 128, 128>}, {pipeline_mode = #tpu.pipeline_mode<synchronous>, transform_indices = @transform_6, window_bounds = array<i64: 2, 4, 128>}, {pipeline_mode = #tpu.pipeline_mode<synchronous>, transform_indices = @transform_7, window_bounds = array<i64: 128, 128>}, {pipeline_mode = #tpu.pipeline_mode<synchronous>, transform_indices = @transform_8, window_bounds = array<i64: 1, 128>}, {transform_indices = @transform_9, window_bounds = array<i64: 32, 128>}]} {
    %c0 = arith.constant 0 : index
    %c0_0 = arith.constant 0 : index
    %0 = vector.load %arg1[%c0, %c0_0] : memref<32x128xbf16, #tpu.memory_space<vmem>>, vector<32x128xbf16>
    %c0_1 = arith.constant 0 : index
    %c0_2 = arith.constant 0 : index
    %1 = vector.load %arg2[%c0_1, %c0_2] : memref<128x128xbf16, #tpu.memory_space<vmem>>, vector<128x128xbf16>
    %cst = arith.constant dense<0.000000e+00> : vector<32x128xf32>
    %2 = tpu.matmul %0, %1, %cst {dimension_numbers = #tpu.dot_dimension_numbers<[1], [0], [0], [1], [0, 0, 1, 1], [], []>} : vector<32x128xbf16>, vector<128x128xbf16>, vector<32x128xf32> -> vector<32x128xf32>
    %c0_3 = arith.constant 0 : index
    %c0_4 = arith.constant 0 : index
    %3 = vector.load %arg3[%c0_3, %c0_4] : memref<4x128xf32, #tpu.memory_space<vmem>>, vector<4x128xf32>
    %4 = vector.extract_strided_slice %3 {offsets = [0, 0], sizes = [1, 128], strides = [1, 1]} : vector<4x128xf32> to vector<1x128xf32>
    %5 = vector.extract_strided_slice %3 {offsets = [1, 0], sizes = [1, 128], strides = [1, 1]} : vector<4x128xf32> to vector<1x128xf32>
    %6 = vector.extract_strided_slice %3 {offsets = [2, 0], sizes = [1, 128], strides = [1, 1]} : vector<4x128xf32> to vector<1x128xf32>
    %7 = vector.extract_strided_slice %3 {offsets = [3, 0], sizes = [1, 128], strides = [1, 1]} : vector<4x128xf32> to vector<1x128xf32>
    %8 = vector.broadcast %6 : vector<1x128xf32> to vector<32x128xf32>
    %9 = arith.subf %2, %8 : vector<32x128xf32>
    %cst_5 = arith.constant 9.99999974E-6 : f32
    %10 = vector.broadcast %cst_5 : f32 to vector<1x128xf32>
    %11 = arith.addf %7, %10 : vector<1x128xf32>
    %12 = math.rsqrt %11 : vector<1x128xf32>
    %13 = arith.mulf %4, %12 : vector<1x128xf32>
    %14 = vector.broadcast %13 : vector<1x128xf32> to vector<32x128xf32>
    %15 = arith.mulf %9, %14 : vector<32x128xf32>
    %16 = vector.broadcast %5 : vector<1x128xf32> to vector<32x128xf32>
    %17 = arith.addf %15, %16 : vector<32x128xf32>
    %cst_6 = arith.constant 0.000000e+00 : f32
    %18 = vector.broadcast %cst_6 : f32 to vector<32x128xf32>
    %19 = arith.maximumf %17, %18 : vector<32x128xf32>
    %20 = arith.truncf %19 : vector<32x128xf32> to vector<32x128xbf16>
    %c0_7 = arith.constant 0 : index
    %c0_8 = arith.constant 0 : index
    %c0_9 = arith.constant 0 : index
    %21 = vector.load %arg4[%c0_7, %c0_8, %c0_9] : memref<2x128x128xbf16, #tpu.memory_space<vmem>>, vector<1x128x128xbf16>
    %22 = vector.shape_cast %21 : vector<1x128x128xbf16> to vector<128x128xbf16>
    %cst_10 = arith.constant dense<0.000000e+00> : vector<32x128xf32>
    %23 = tpu.matmul %20, %22, %cst_10 {dimension_numbers = #tpu.dot_dimension_numbers<[1], [0], [0], [1], [0, 0, 1, 1], [], []>} : vector<32x128xbf16>, vector<128x128xbf16>, vector<32x128xf32> -> vector<32x128xf32>
    %c0_11 = arith.constant 0 : index
    %c0_12 = arith.constant 0 : index
    %c0_13 = arith.constant 0 : index
    %24 = vector.load %arg5[%c0_11, %c0_12, %c0_13] : memref<2x4x128xf32, #tpu.memory_space<vmem>>, vector<1x4x128xf32>
    %25 = vector.shape_cast %24 : vector<1x4x128xf32> to vector<4x128xf32>
    %26 = vector.extract_strided_slice %25 {offsets = [0, 0], sizes = [1, 128], strides = [1, 1]} : vector<4x128xf32> to vector<1x128xf32>
    %27 = vector.extract_strided_slice %25 {offsets = [1, 0], sizes = [1, 128], strides = [1, 1]} : vector<4x128xf32> to vector<1x128xf32>
    %28 = vector.extract_strided_slice %25 {offsets = [2, 0], sizes = [1, 128], strides = [1, 1]} : vector<4x128xf32> to vector<1x128xf32>
    %29 = vector.extract_strided_slice %25 {offsets = [3, 0], sizes = [1, 128], strides = [1, 1]} : vector<4x128xf32> to vector<1x128xf32>
    %30 = vector.broadcast %28 : vector<1x128xf32> to vector<32x128xf32>
    %31 = arith.subf %23, %30 : vector<32x128xf32>
    %cst_14 = arith.constant 9.99999974E-6 : f32
    %32 = vector.broadcast %cst_14 : f32 to vector<1x128xf32>
    %33 = arith.addf %29, %32 : vector<1x128xf32>
    %34 = math.rsqrt %33 : vector<1x128xf32>
    %35 = arith.mulf %26, %34 : vector<1x128xf32>
    %36 = vector.broadcast %35 : vector<1x128xf32> to vector<32x128xf32>
    %37 = arith.mulf %31, %36 : vector<32x128xf32>
    %38 = vector.broadcast %27 : vector<1x128xf32> to vector<32x128xf32>
    %39 = arith.addf %37, %38 : vector<32x128xf32>
    %cst_15 = arith.constant 0.000000e+00 : f32
    %40 = vector.broadcast %cst_15 : f32 to vector<32x128xf32>
    %41 = arith.maximumf %39, %40 : vector<32x128xf32>
    %42 = arith.truncf %41 : vector<32x128xf32> to vector<32x128xbf16>
    %c0_16 = arith.constant 0 : index
    %c0_17 = arith.constant 0 : index
    %c0_18 = arith.constant 0 : index
    %43 = vector.load %arg6[%c0_16, %c0_17, %c0_18] : memref<2x128x128xbf16, #tpu.memory_space<vmem>>, vector<1x128x128xbf16>
    %44 = vector.shape_cast %43 : vector<1x128x128xbf16> to vector<128x128xbf16>
    %cst_19 = arith.constant dense<0.000000e+00> : vector<32x128xf32>
    %45 = tpu.matmul %42, %44, %cst_19 {dimension_numbers = #tpu.dot_dimension_numbers<[1], [0], [0], [1], [0, 0, 1, 1], [], []>} : vector<32x128xbf16>, vector<128x128xbf16>, vector<32x128xf32> -> vector<32x128xf32>
    %c0_20 = arith.constant 0 : index
    %c0_21 = arith.constant 0 : index
    %c0_22 = arith.constant 0 : index
    %46 = vector.load %arg7[%c0_20, %c0_21, %c0_22] : memref<2x4x128xf32, #tpu.memory_space<vmem>>, vector<1x4x128xf32>
    %47 = vector.shape_cast %46 : vector<1x4x128xf32> to vector<4x128xf32>
    %48 = vector.extract_strided_slice %47 {offsets = [0, 0], sizes = [1, 128], strides = [1, 1]} : vector<4x128xf32> to vector<1x128xf32>
    %49 = vector.extract_strided_slice %47 {offsets = [1, 0], sizes = [1, 128], strides = [1, 1]} : vector<4x128xf32> to vector<1x128xf32>
    %50 = vector.extract_strided_slice %47 {offsets = [2, 0], sizes = [1, 128], strides = [1, 1]} : vector<4x128xf32> to vector<1x128xf32>
    %51 = vector.extract_strided_slice %47 {offsets = [3, 0], sizes = [1, 128], strides = [1, 1]} : vector<4x128xf32> to vector<1x128xf32>
    %52 = vector.broadcast %50 : vector<1x128xf32> to vector<32x128xf32>
    %53 = arith.subf %45, %52 : vector<32x128xf32>
    %cst_23 = arith.constant 9.99999974E-6 : f32
    %54 = vector.broadcast %cst_23 : f32 to vector<1x128xf32>
    %55 = arith.addf %51, %54 : vector<1x128xf32>
    %56 = math.rsqrt %55 : vector<1x128xf32>
    %57 = arith.mulf %48, %56 : vector<1x128xf32>
    %58 = vector.broadcast %57 : vector<1x128xf32> to vector<32x128xf32>
    %59 = arith.mulf %53, %58 : vector<32x128xf32>
    %60 = vector.broadcast %49 : vector<1x128xf32> to vector<32x128xf32>
    %61 = arith.addf %59, %60 : vector<32x128xf32>
    %62 = arith.addf %19, %61 : vector<32x128xf32>
    %63 = arith.truncf %62 : vector<32x128xf32> to vector<32x128xbf16>
    %c1 = arith.constant 1 : index
    %c0_24 = arith.constant 0 : index
    %c0_25 = arith.constant 0 : index
    %64 = vector.load %arg4[%c1, %c0_24, %c0_25] : memref<2x128x128xbf16, #tpu.memory_space<vmem>>, vector<1x128x128xbf16>
    %65 = vector.shape_cast %64 : vector<1x128x128xbf16> to vector<128x128xbf16>
    %cst_26 = arith.constant dense<0.000000e+00> : vector<32x128xf32>
    %66 = tpu.matmul %63, %65, %cst_26 {dimension_numbers = #tpu.dot_dimension_numbers<[1], [0], [0], [1], [0, 0, 1, 1], [], []>} : vector<32x128xbf16>, vector<128x128xbf16>, vector<32x128xf32> -> vector<32x128xf32>
    %c1_27 = arith.constant 1 : index
    %c0_28 = arith.constant 0 : index
    %c0_29 = arith.constant 0 : index
    %67 = vector.load %arg5[%c1_27, %c0_28, %c0_29] : memref<2x4x128xf32, #tpu.memory_space<vmem>>, vector<1x4x128xf32>
    %68 = vector.shape_cast %67 : vector<1x4x128xf32> to vector<4x128xf32>
    %69 = vector.extract_strided_slice %68 {offsets = [0, 0], sizes = [1, 128], strides = [1, 1]} : vector<4x128xf32> to vector<1x128xf32>
    %70 = vector.extract_strided_slice %68 {offsets = [1, 0], sizes = [1, 128], strides = [1, 1]} : vector<4x128xf32> to vector<1x128xf32>
    %71 = vector.extract_strided_slice %68 {offsets = [2, 0], sizes = [1, 128], strides = [1, 1]} : vector<4x128xf32> to vector<1x128xf32>
    %72 = vector.extract_strided_slice %68 {offsets = [3, 0], sizes = [1, 128], strides = [1, 1]} : vector<4x128xf32> to vector<1x128xf32>
    %73 = vector.broadcast %71 : vector<1x128xf32> to vector<32x128xf32>
    %74 = arith.subf %66, %73 : vector<32x128xf32>
    %cst_30 = arith.constant 9.99999974E-6 : f32
    %75 = vector.broadcast %cst_30 : f32 to vector<1x128xf32>
    %76 = arith.addf %72, %75 : vector<1x128xf32>
    %77 = math.rsqrt %76 : vector<1x128xf32>
    %78 = arith.mulf %69, %77 : vector<1x128xf32>
    %79 = vector.broadcast %78 : vector<1x128xf32> to vector<32x128xf32>
    %80 = arith.mulf %74, %79 : vector<32x128xf32>
    %81 = vector.broadcast %70 : vector<1x128xf32> to vector<32x128xf32>
    %82 = arith.addf %80, %81 : vector<32x128xf32>
    %cst_31 = arith.constant 0.000000e+00 : f32
    %83 = vector.broadcast %cst_31 : f32 to vector<32x128xf32>
    %84 = arith.maximumf %82, %83 : vector<32x128xf32>
    %85 = arith.truncf %84 : vector<32x128xf32> to vector<32x128xbf16>
    %c1_32 = arith.constant 1 : index
    %c0_33 = arith.constant 0 : index
    %c0_34 = arith.constant 0 : index
    %86 = vector.load %arg6[%c1_32, %c0_33, %c0_34] : memref<2x128x128xbf16, #tpu.memory_space<vmem>>, vector<1x128x128xbf16>
    %87 = vector.shape_cast %86 : vector<1x128x128xbf16> to vector<128x128xbf16>
    %cst_35 = arith.constant dense<0.000000e+00> : vector<32x128xf32>
    %88 = tpu.matmul %85, %87, %cst_35 {dimension_numbers = #tpu.dot_dimension_numbers<[1], [0], [0], [1], [0, 0, 1, 1], [], []>} : vector<32x128xbf16>, vector<128x128xbf16>, vector<32x128xf32> -> vector<32x128xf32>
    %c1_36 = arith.constant 1 : index
    %c0_37 = arith.constant 0 : index
    %c0_38 = arith.constant 0 : index
    %89 = vector.load %arg7[%c1_36, %c0_37, %c0_38] : memref<2x4x128xf32, #tpu.memory_space<vmem>>, vector<1x4x128xf32>
    %90 = vector.shape_cast %89 : vector<1x4x128xf32> to vector<4x128xf32>
    %91 = vector.extract_strided_slice %90 {offsets = [0, 0], sizes = [1, 128], strides = [1, 1]} : vector<4x128xf32> to vector<1x128xf32>
    %92 = vector.extract_strided_slice %90 {offsets = [1, 0], sizes = [1, 128], strides = [1, 1]} : vector<4x128xf32> to vector<1x128xf32>
    %93 = vector.extract_strided_slice %90 {offsets = [2, 0], sizes = [1, 128], strides = [1, 1]} : vector<4x128xf32> to vector<1x128xf32>
    %94 = vector.extract_strided_slice %90 {offsets = [3, 0], sizes = [1, 128], strides = [1, 1]} : vector<4x128xf32> to vector<1x128xf32>
    %95 = vector.broadcast %93 : vector<1x128xf32> to vector<32x128xf32>
    %96 = arith.subf %88, %95 : vector<32x128xf32>
    %cst_39 = arith.constant 9.99999974E-6 : f32
    %97 = vector.broadcast %cst_39 : f32 to vector<1x128xf32>
    %98 = arith.addf %94, %97 : vector<1x128xf32>
    %99 = math.rsqrt %98 : vector<1x128xf32>
    %100 = arith.mulf %91, %99 : vector<1x128xf32>
    %101 = vector.broadcast %100 : vector<1x128xf32> to vector<32x128xf32>
    %102 = arith.mulf %96, %101 : vector<32x128xf32>
    %103 = vector.broadcast %92 : vector<1x128xf32> to vector<32x128xf32>
    %104 = arith.addf %102, %103 : vector<32x128xf32>
    %105 = arith.addf %62, %104 : vector<32x128xf32>
    %106 = arith.truncf %105 : vector<32x128xf32> to vector<32x128xbf16>
    %c0_40 = arith.constant 0 : index
    %c0_41 = arith.constant 0 : index
    %107 = vector.load %arg8[%c0_40, %c0_41] : memref<128x128xbf16, #tpu.memory_space<vmem>>, vector<128x128xbf16>
    %cst_42 = arith.constant dense<0.000000e+00> : vector<32x128xf32>
    %108 = tpu.matmul %106, %107, %cst_42 {dimension_numbers = #tpu.dot_dimension_numbers<[1], [0], [0], [1], [0, 0, 1, 1], [], []>} : vector<32x128xbf16>, vector<128x128xbf16>, vector<32x128xf32> -> vector<32x128xf32>
    %c0_43 = arith.constant 0 : index
    %c0_44 = arith.constant 0 : index
    %109 = vector.load %arg9[%c0_43, %c0_44] : memref<1x128xf32, #tpu.memory_space<vmem>>, vector<1x128xf32>
    %110 = vector.broadcast %109 : vector<1x128xf32> to vector<32x128xf32>
    %111 = arith.addf %108, %110 : vector<32x128xf32>
    %c0_45 = arith.constant 0 : index
    %c0_46 = arith.constant 0 : index
    %112 = vector.load %arg10[%c0_45, %c0_46] : memref<32x128xf32, #tpu.memory_space<vmem>>, vector<32x128xf32>
    tpu.vector_store %arg10[%c0_45, %c0_46], %111 {strides = array<i32>} : memref<32x128xf32, #tpu.memory_space<vmem>>, vector<32x128xf32>,
    return
  }
  func.func @transform_0(%arg0: i32) -> (i32, i32) {
    %c0_i32 = arith.constant 0 : i32
    %c0_i32_0 = arith.constant 0 : i32
    return %arg0, %c0_i32 : i32, i32
  }
  func.func @transform_1(%arg0: i32) -> (i32, i32) {
    %c0_i32 = arith.constant 0 : i32
    %c0_i32_0 = arith.constant 0 : i32
    %c0_i32_1 = arith.constant 0 : i32
    return %c0_i32, %c0_i32_0 : i32, i32
  }
  func.func @transform_2(%arg0: i32) -> (i32, i32) {
    %c0_i32 = arith.constant 0 : i32
    %c0_i32_0 = arith.constant 0 : i32
    %c0_i32_1 = arith.constant 0 : i32
    return %c0_i32, %c0_i32_0 : i32, i32
  }
  func.func @transform_3(%arg0: i32) -> (i32, i32, i32) {
    %c0_i32 = arith.constant 0 : i32
    %c0_i32_0 = arith.constant 0 : i32
    %c0_i32_1 = arith.constant 0 : i32
    %c0_i32_2 = arith.constant 0 : i32
    return %c0_i32, %c0_i32_0, %c0_i32_1 : i32, i32, i32
  }
  func.func @transform_4(%arg0: i32) -> (i32, i32, i32) {
    %c0_i32 = arith.constant 0 : i32
    %c0_i32_0 = arith.constant 0 : i32
    %c0_i32_1 = arith.constant 0 : i32
    %c0_i32_2 = arith.constant 0 : i32
    return %c0_i32, %c0_i32_0, %c0_i32_1 : i32, i32, i32
  }
  func.func @transform_5(%arg0: i32) -> (i32, i32, i32) {
    %c0_i32 = arith.constant 0 : i32
    %c0_i32_0 = arith.constant 0 : i32
    %c0_i32_1 = arith.constant 0 : i32
    %c0_i32_2 = arith.constant 0 : i32
    return %c0_i32, %c0_i32_0, %c0_i32_1 : i32, i32, i32
  }
  func.func @transform_6(%arg0: i32) -> (i32, i32, i32) {
    %c0_i32 = arith.constant 0 : i32
    %c0_i32_0 = arith.constant 0 : i32
    %c0_i32_1 = arith.constant 0 : i32
    %c0_i32_2 = arith.constant 0 : i32
    return %c0_i32, %c0_i32_0, %c0_i32_1 : i32, i32, i32
  }
  func.func @transform_7(%arg0: i32) -> (i32, i32) {
    %c0_i32 = arith.constant 0 : i32
    %c0_i32_0 = arith.constant 0 : i32
    %c0_i32_1 = arith.constant 0 : i32
    return %c0_i32, %c0_i32_0 : i32, i32
  }
  func.func @transform_8(%arg0: i32) -> (i32, i32) {
    %c0_i32 = arith.constant 0 : i32
    %c0_i32_0 = arith.constant 0 : i32
    %c0_i32_1 = arith.constant 0 : i32
    return %c0_i32, %c0_i32_0 : i32, i32
  }
  func.func @transform_9(%arg0: i32) -> (i32, i32) {
    %c0_i32 = arith.constant 0 : i32
    %c0_i32_0 = arith.constant 0 : i32
    return %arg0, %c0_i32 : i32, i32
  }
}

module attributes {stable_mosaic.version = 11 : i64} {
  func.func @stretch_avg_kernel(%arg0: i32, %arg1: i32, %arg2: memref<32x128xf32, #tpu.memory_space<vmem>>, %arg3: memref<32x128xf32, #tpu.memory_space<vmem>>, %arg4: memref<32x128xf32, #tpu.memory_space<vmem>>, %arg5: memref<2x32x128xf32, #tpu.memory_space<vmem>>) attributes {dimension_semantics = [#tpu.dimension_semantics<parallel>, #tpu.dimension_semantics<parallel>], iteration_bounds = array<i64: 1, 1>, scalar_prefetch = 0 : i64, scratch_operands = 0 : i64, tpu.core_type = #tpu.core_type<tc>, window_params = [{transform_indices = @transform_0, window_bounds = array<i64: 32, 128>}, {transform_indices = @transform_1, window_bounds = array<i64: 32, 128>}, {transform_indices = @transform_2, window_bounds = array<i64: 32, 128>}, {transform_indices = @transform_3, window_bounds = array<i64: 2, 32, 128>}]} {
    %c0 = arith.constant 0 : index
    %c0_0 = arith.constant 0 : index
    %0 = vector.load %arg2[%c0, %c0_0] : memref<32x128xf32, #tpu.memory_space<vmem>>, vector<32x128xf32>
    %c0_1 = arith.constant 0 : index
    %c0_2 = arith.constant 0 : index
    %1 = vector.load %arg4[%c0_1, %c0_2] : memref<32x128xf32, #tpu.memory_space<vmem>>, vector<32x128xf32>
    %c0_3 = arith.constant 0 : index
    %c0_4 = arith.constant 0 : index
    %2 = vector.load %arg3[%c0_3, %c0_4] : memref<32x128xf32, #tpu.memory_space<vmem>>, vector<32x128xf32>
    %cst = arith.constant 4.000000e-01 : f32
    %3 = vector.broadcast %cst : f32 to vector<32x128xf32>
    %4 = arith.mulf %3, %2 : vector<32x128xf32>
    %cst_5 = arith.constant 4.000000e-01 : f32
    %5 = vector.broadcast %cst_5 : f32 to vector<32x128xf32>
    %6 = arith.mulf %5, %0 : vector<32x128xf32>
    %7 = arith.addf %4, %6 : vector<32x128xf32>
    %cst_6 = arith.constant 2.000000e-01 : f32
    %8 = vector.broadcast %cst_6 : f32 to vector<32x128xf32>
    %9 = arith.mulf %8, %1 : vector<32x128xf32>
    %10 = arith.addf %7, %9 : vector<32x128xf32>
    %c0_7 = arith.constant 0 : index
    %c0_8 = arith.constant 0 : index
    %c0_9 = arith.constant 0 : index
    %11 = vector.load %arg5[%c0_7, %c0_8, %c0_9] : memref<2x32x128xf32, #tpu.memory_space<vmem>>, vector<1x32x128xf32>
    %12 = vector.shape_cast %11 : vector<1x32x128xf32> to vector<32x128xf32>
    %13 = vector.shape_cast %10 : vector<32x128xf32> to vector<1x32x128xf32>
    tpu.vector_store %arg5[%c0_7, %c0_8, %c0_9], %13 {strides = array<i32>} : memref<2x32x128xf32, #tpu.memory_space<vmem>>, vector<1x32x128xf32>,
    %cst_10 = arith.constant 2.000000e-01 : f32
    %14 = vector.broadcast %cst_10 : f32 to vector<32x128xf32>
    %15 = arith.mulf %14, %0 : vector<32x128xf32>
    %16 = arith.addf %4, %15 : vector<32x128xf32>
    %cst_11 = arith.constant 4.000000e-01 : f32
    %17 = vector.broadcast %cst_11 : f32 to vector<32x128xf32>
    %18 = arith.mulf %17, %1 : vector<32x128xf32>
    %19 = arith.addf %16, %18 : vector<32x128xf32>
    %c1 = arith.constant 1 : index
    %c0_12 = arith.constant 0 : index
    %c0_13 = arith.constant 0 : index
    %20 = vector.load %arg5[%c1, %c0_12, %c0_13] : memref<2x32x128xf32, #tpu.memory_space<vmem>>, vector<1x32x128xf32>
    %21 = vector.shape_cast %20 : vector<1x32x128xf32> to vector<32x128xf32>
    %22 = vector.shape_cast %19 : vector<32x128xf32> to vector<1x32x128xf32>
    tpu.vector_store %arg5[%c1, %c0_12, %c0_13], %22 {strides = array<i32>} : memref<2x32x128xf32, #tpu.memory_space<vmem>>, vector<1x32x128xf32>,
    return
  }
  func.func @transform_0(%arg0: i32, %arg1: i32) -> (i32, i32) {
    %c0_i32 = arith.constant 0 : i32
    return %arg0, %arg1 : i32, i32
  }
  func.func @transform_1(%arg0: i32, %arg1: i32) -> (i32, i32) {
    %c0_i32 = arith.constant 0 : i32
    return %arg0, %arg1 : i32, i32
  }
  func.func @transform_2(%arg0: i32, %arg1: i32) -> (i32, i32) {
    %c0_i32 = arith.constant 0 : i32
    return %arg0, %arg1 : i32, i32
  }
  func.func @transform_3(%arg0: i32, %arg1: i32) -> (i32, i32, i32) {
    %c0_i32 = arith.constant 0 : i32
    %c0_i32_0 = arith.constant 0 : i32
    return %c0_i32, %arg0, %arg1 : i32, i32, i32
  }
}

</mosaic_0001>

<llo_original>
// kernel: upsample_network_forward.4
$region0: #{upsample_network_forward.4}
  #allocation0 [shape = 'u32[]', space=smem, size = 0x4, offset = 0x4, fixed_abs, tag = 'smem constant byte address 0x4 - core index']
  #allocation1 [shape = 'u32[144,128]{1,0:T(1,128)}', space=vmem, size = 0x12000, scoped, tag = 'internal scratch']
  %s0 = inlined_call_operand.vmem [shape: f32[32,128], index: 0, kind: input, shape index: {}]
  %s1 = inlined_call_operand.vmem [shape: f32[32,128], index: 1, kind: input, shape index: {}]
  %s2 = inlined_call_operand.vmem [shape: f32[32,128], index: 2, kind: input, shape index: {}]
  %s3 = inlined_call_operand.vmem [shape: f32[2,32,128], index: 3, kind: output, shape index: {}]
  %s4 = sld [smem:[#allocation0]]
  $region22: #{upsample_network_forward.4} parent=0
    _
  %s6 = ssub.s32 1, %s4
  %s7 = scalar_select 0, %s6, %s4
  // Predicated region
  $region2: #{upsample_network_forward.4} parent=0 // pred_check
    _
  $region3: #{upsample_network_forward.4} parent=0 // pred_check_branch
    %9 = sbr.rel (0) target = $region5
  $region4: #{upsample_network_forward.4} parent=0 // pred_region
    _
  $region5: #{upsample_network_forward.4} parent=0 // pred_fallthru
    _
  // Predicated region
  $region6: #{upsample_network_forward.4} parent=0 // pred_check
    _
  $region7: #{upsample_network_forward.4} parent=0 // pred_check_branch
    %11 = sbr.rel (0) target = $region9
  $region8: #{upsample_network_forward.4} parent=0 // pred_region
    _
  $region9: #{upsample_network_forward.4} parent=0 // pred_fallthru
    _
  // Predicated region
  $region10: #{upsample_network_forward.4} parent=0 // pred_check
    _
  $region11: #{upsample_network_forward.4} parent=0 // pred_check_branch
    %13 = sbr.rel (0) target = $region13
  $region12: #{upsample_network_forward.4} parent=0 // pred_region
    _
  $region13: #{upsample_network_forward.4} parent=0 // pred_fallthru
    _
  %v14 = vld [vmem:[%s0] sm:$0xff]
  %v15 = vld [vmem:[%s0 + $0x8] sm:$0xff]
  %v16 = vld [vmem:[%s0 + $0x10] sm:$0xff]
  %v17 = vld [vmem:[%s0 + $0x18] sm:$0xff]
  %v18 = vld [vmem:[%s2] sm:$0xff]
  %v19 = vld [vmem:[%s2 + $0x8] sm:$0xff]
  %v20 = vld [vmem:[%s2 + $0x10] sm:$0xff]
  %v21 = vld [vmem:[%s2 + $0x18] sm:$0xff]
  %v22 = vld [vmem:[%s1] sm:$0xff]
  %v23 = vld [vmem:[%s1 + $0x8] sm:$0xff]
  %v24 = vld [vmem:[%s1 + $0x10] sm:$0xff]
  %v25 = vld [vmem:[%s1 + $0x18] sm:$0xff]
  %v26 = vmul.f32 %v22, 0.4
  %v27 = vmul.f32 %v23, 0.4
  %v28 = vmul.f32 %v24, 0.4
  %v29 = vmul.f32 %v25, 0.4
  %v30 = vmul.f32 %v14, 0.4
  %v31 = vmul.f32 %v15, 0.4
  %v32 = vmul.f32 %v16, 0.4
  %v33 = vmul.f32 %v17, 0.4
  %v34 = vadd.f32 %v26, %v30
  %v35 = vadd.f32 %v27, %v31
  %v36 = vadd.f32 %v28, %v32
  %v37 = vadd.f32 %v29, %v33
  %v38 = vmul.f32 %v18, 0.2
  %v39 = vmul.f32 %v19, 0.2
  %v40 = vmul.f32 %v20, 0.2
  %v41 = vmul.f32 %v21, 0.2
  %v42 = vadd.f32 %v34, %v38
  %v43 = vadd.f32 %v35, %v39
  %v44 = vadd.f32 %v36, %v40
  %v45 = vadd.f32 %v37, %v41
  %46 = vst [vmem:[%s3] sm:$0xff] %v42
  %47 = vst [vmem:[%s3 + $0x8] sm:$0xff] %v43
  %48 = vst [vmem:[%s3 + $0x10] sm:$0xff] %v44
  %49 = vst [vmem:[%s3 + $0x18] sm:$0xff] %v45
  %v50 = vmul.f32 %v14, 0.2
  %v51 = vmul.f32 %v15, 0.2
  %v52 = vmul.f32 %v16, 0.2
  %v53 = vmul.f32 %v17, 0.2
  %v54 = vadd.f32 %v26, %v50
  %v55 = vadd.f32 %v27, %v51
  %v56 = vadd.f32 %v28, %v52
  %v57 = vadd.f32 %v29, %v53
  %v58 = vmul.f32 %v18, 0.4
  %v59 = vmul.f32 %v19, 0.4
  %v60 = vmul.f32 %v20, 0.4
  %v61 = vmul.f32 %v21, 0.4
  %v62 = vadd.f32 %v54, %v58
  %v63 = vadd.f32 %v55, %v59
  %v64 = vadd.f32 %v56, %v60
  %v65 = vadd.f32 %v57, %v61
  %s66 = scalar_lea.vmem %s3, 32
  %67 = vst [vmem:[%s66] sm:$0xff] %v62
  %68 = vst [vmem:[%s66 + $0x8] sm:$0xff] %v63
  %69 = vst [vmem:[%s66 + $0x10] sm:$0xff] %v64
  %70 = vst [vmem:[%s66 + $0x18] sm:$0xff] %v65
  // Predicated region
  $region14: #{upsample_network_forward.4} parent=0 // pred_check
    _
  $region15: #{upsample_network_forward.4} parent=0 // pred_check_branch
    %72 = sbr.rel (0) target = $region17
  $region16: #{upsample_network_forward.4} parent=0 // pred_region
    _
  $region17: #{upsample_network_forward.4} parent=0 // pred_fallthru
    _
  // Predicated region
  $region18: #{upsample_network_forward.4} parent=0 // pred_check
    _
  $region19: #{upsample_network_forward.4} parent=0 // pred_check_branch
    %74 = sbr.rel (0) target = $region21
  $region20: #{upsample_network_forward.4} parent=0 // pred_region
    _
  $region21: #{upsample_network_forward.4} parent=0 // pred_fallthru
    _

// kernel: upsample_network_forward.3
$region0: #{upsample_network_forward.3}
  #allocation0 [shape = 'u32[]', space=smem, size = 0x4, offset = 0x4, fixed_abs, tag = 'smem constant byte address 0x4 - core index']
  #allocation1 [shape = 'u32[144,128]{1,0:T(1,128)}', space=vmem, size = 0x12000, scoped, tag = 'internal scratch']
  %s0 = inlined_call_operand.vmem [shape: bf16[32,128], index: 0, kind: input, shape index: {}]
  %s1 = inlined_call_operand.vmem [shape: bf16[128,128], index: 1, kind: input, shape index: {}]
  %s2 = inlined_call_operand.vmem [shape: f32[4,128], index: 2, kind: input, shape index: {}]
  %s3 = inlined_call_operand.vmem [shape: bf16[2,128,128], index: 3, kind: input, shape index: {}]
  %s4 = inlined_call_operand.vmem [shape: f32[2,4,128], index: 4, kind: input, shape index: {}]
  %s5 = inlined_call_operand.vmem [shape: bf16[2,128,128], index: 5, kind: input, shape index: {}]
  %s6 = inlined_call_operand.vmem [shape: f32[2,4,128], index: 6, kind: input, shape index: {}]
  %s7 = inlined_call_operand.vmem [shape: bf16[128,128], index: 7, kind: input, shape index: {}]
  %s8 = inlined_call_operand.vmem [shape: f32[1,128], index: 8, kind: input, shape index: {}]
  %s9 = inlined_call_operand.vmem [shape: f32[32,128], index: 9, kind: output, shape index: {}]
  %s10 = sld [smem:[#allocation0]]
  $region46: #{upsample_network_forward.3} parent=0
    _
  %s12 = ssub.s32 1, %s10
  %s13 = scalar_select 0, %s12, %s10
  // Predicated region
  $region2: #{upsample_network_forward.3} parent=0 // pred_check
    _
  $region3: #{upsample_network_forward.3} parent=0 // pred_check_branch
    %15 = sbr.rel (0) target = $region5
  $region4: #{upsample_network_forward.3} parent=0 // pred_region
    _
  $region5: #{upsample_network_forward.3} parent=0 // pred_fallthru
    _
  // Predicated region
  $region6: #{upsample_network_forward.3} parent=0 // pred_check
    _
  $region7: #{upsample_network_forward.3} parent=0 // pred_check_branch
    %17 = sbr.rel (0) target = $region9
  $region8: #{upsample_network_forward.3} parent=0 // pred_region
    _
  $region9: #{upsample_network_forward.3} parent=0 // pred_fallthru
    _
  // Predicated region
  $region10: #{upsample_network_forward.3} parent=0 // pred_check
    _
  $region11: #{upsample_network_forward.3} parent=0 // pred_check_branch
    %19 = sbr.rel (0) target = $region13
  $region12: #{upsample_network_forward.3} parent=0 // pred_region
    _
  $region13: #{upsample_network_forward.3} parent=0 // pred_fallthru
    _
  // Predicated region
  $region14: #{upsample_network_forward.3} parent=0 // pred_check
    _
  $region15: #{upsample_network_forward.3} parent=0 // pred_check_branch
    %21 = sbr.rel (0) target = $region17
  $region16: #{upsample_network_forward.3} parent=0 // pred_region
    _
  $region17: #{upsample_network_forward.3} parent=0 // pred_fallthru
    _
  // Predicated region
  $region18: #{upsample_network_forward.3} parent=0 // pred_check
    _
  $region19: #{upsample_network_forward.3} parent=0 // pred_check_branch
    %23 = sbr.rel (0) target = $region21
  $region20: #{upsample_network_forward.3} parent=0 // pred_region
    _
  $region21: #{upsample_network_forward.3} parent=0 // pred_fallthru
    _
  // Predicated region
  $region22: #{upsample_network_forward.3} parent=0 // pred_check
    _
  $region23: #{upsample_network_forward.3} parent=0 // pred_check_branch
    %25 = sbr.rel (0) target = $region25
  $region24: #{upsample_network_forward.3} parent=0 // pred_region
    _
  $region25: #{upsample_network_forward.3} parent=0 // pred_fallthru
    _
  // Predicated region
  $region26: #{upsample_network_forward.3} parent=0 // pred_check
    _
  $region27: #{upsample_network_forward.3} parent=0 // pred_check_branch
    %27 = sbr.rel (0) target = $region29
  $region28: #{upsample_network_forward.3} parent=0 // pred_region
    _
  $region29: #{upsample_network_forward.3} parent=0 // pred_fallthru
    _
  // Predicated region
  $region30: #{upsample_network_forward.3} parent=0 // pred_check
    _
  $region31: #{upsample_network_forward.3} parent=0 // pred_check_branch
    %29 = sbr.rel (0) target = $region33
  $region32: #{upsample_network_forward.3} parent=0 // pred_region
    _
  $region33: #{upsample_network_forward.3} parent=0 // pred_fallthru
    _
  // Predicated region
  $region34: #{upsample_network_forward.3} parent=0 // pred_check
    _
  $region35: #{upsample_network_forward.3} parent=0 // pred_check_branch
    %31 = sbr.rel (0) target = $region37
  $region36: #{upsample_network_forward.3} parent=0 // pred_region
    _
  $region37: #{upsample_network_forward.3} parent=0 // pred_fallthru
    _
  %v33 = vld [vmem:[%s0] sm:$0xf]
  %v34 = vld [vmem:[%s0 + $0x4] sm:$0xf]
  %v35 = vld [vmem:[%s0 + $0x8] sm:$0xf]
  %v36 = vld [vmem:[%s0 + $0xc] sm:$0xf]
  %v37 = vld [vmem:[%s1] sm:$0xf]
  %v38 = vld [vmem:[%s1 + $0x4] sm:$0xf]
  %v39 = vld [vmem:[%s1 + $0x8] sm:$0xf]
  %v40 = vld [vmem:[%s1 + $0xc] sm:$0xf]
  %v41 = vld [vmem:[%s1 + $0x10] sm:$0xf]
  %v42 = vld [vmem:[%s1 + $0x14] sm:$0xf]
  %v43 = vld [vmem:[%s1 + $0x18] sm:$0xf]
  %v44 = vld [vmem:[%s1 + $0x1c] sm:$0xf]
  %v45 = vld [vmem:[%s1 + $0x20] sm:$0xf]
  %v46 = vld [vmem:[%s1 + $0x24] sm:$0xf]
  %v47 = vld [vmem:[%s1 + $0x28] sm:$0xf]
  %v48 = vld [vmem:[%s1 + $0x2c] sm:$0xf]
  %v49 = vld [vmem:[%s1 + $0x30] sm:$0xf]
  %v50 = vld [vmem:[%s1 + $0x34] sm:$0xf]
  %v51 = vld [vmem:[%s1 + $0x38] sm:$0xf]
  %v52 = vld [vmem:[%s1 + $0x3c] sm:$0xf]
  %v57 = vunpack.c.l.b16 %v33
  %v58 = vunpack.c.l.b16 %v34
  %v59 = vunpack.c.l.b16 %v35
  %v60 = vunpack.c.l.b16 %v36
  %v61 = vpack.c.b16 %v58, %v57
  %v62 = vpack.c.b16 %v60, %v59
  %v81 = vunpack.c.l.b16 %v37
  %v82 = vunpack.c.l.b16 %v38
  %v83 = vunpack.c.l.b16 %v39
  %v84 = vunpack.c.l.b16 %v40
  %v85 = vunpack.c.l.b16 %v41
  %v86 = vunpack.c.l.b16 %v42
  %v87 = vunpack.c.l.b16 %v43
  %v88 = vunpack.c.l.b16 %v44
  %v89 = vunpack.c.l.b16 %v45
  %v90 = vunpack.c.l.b16 %v46
  %v91 = vunpack.c.l.b16 %v47
  %v92 = vunpack.c.l.b16 %v48
  %v93 = vunpack.c.l.b16 %v49
  %v94 = vunpack.c.l.b16 %v50
  %v95 = vunpack.c.l.b16 %v51
  %v96 = vunpack.c.l.b16 %v52
  %v97 = vpack.c.b16 %v82, %v81
  %v98 = vpack.c.b16 %v84, %v83
  %v99 = vpack.c.b16 %v86, %v85
  %v100 = vpack.c.b16 %v88, %v87
  %v101 = vpack.c.b16 %v90, %v89
  %v102 = vpack.c.b16 %v92, %v91
  %v103 = vpack.c.b16 %v94, %v93
  %v104 = vpack.c.b16 %v96, %v95
  %113 = vmatprep.subr.bf16.mxu0 0
  %114 = vmatpush1.bf16.msra.mxu0 %v97
  %115 = vmatprep.subr.bf16.mxu0 0
  %116 = vmatpush1.bf16.msra.mxu0 %v98
  %117 = vmatprep.subr.bf16.mxu0 0
  %118 = vmatpush1.bf16.msra.mxu0 %v99
  %119 = vmatprep.subr.bf16.mxu0 0
  %120 = vmatpush1.bf16.msra.mxu0 %v100
  %121 = vmatprep.subr.bf16.mxu0 0
  %122 = vmatpush1.bf16.msra.mxu0 %v101
  %123 = vmatprep.subr.bf16.mxu0 0
  %124 = vmatpush1.bf16.msra.mxu0 %v102
  %125 = vmatprep.subr.bf16.mxu0 0
  %126 = vmatpush1.bf16.msra.mxu0 %v103
  %127 = vmatprep.subr.bf16.mxu0 0
  %128 = vmatpush1.bf16.msra.mxu0 %v104
  %129 = vmatprep.subr.bf16.mxu0 0
  %130 = vmatpush1.bf16.msra.mxu0 0
  %131 = vmatprep.subr.bf16.mxu0 0
  %132 = vmatpush1.bf16.msra.mxu0 0
  %133 = vmatprep.subr.bf16.mxu0 0
  %134 = vmatpush1.bf16.msra.mxu0 0
  %135 = vmatprep.subr.bf16.mxu0 0
  %136 = vmatpush1.bf16.msra.mxu0 0
  %137 = vmatprep.subr.bf16.mxu0 0
  %138 = vmatpush1.bf16.msra.mxu0 0
  %139 = vmatprep.subr.bf16.mxu0 0
  %140 = vmatpush1.bf16.msra.mxu0 0
  %141 = vmatprep.subr.bf16.mxu0 0
  %142 = vmatpush1.bf16.msra.mxu0 0
  %143 = vmatprep.subr.bf16.mxu0 0
  %144 = vmatpush1.bf16.msra.mxu0 0
  %145 = vmatprep.mubr.bf16.mxu0 0
  %146 = vmatmul.mubr.bf16.gmra.mrb[0].mxu0 %v61
  %v147 = vpop.f32.mrb[0].mxu0
  %v148 = vadd.f32 0.0, %v147
  %v149 = vpop.f32.mrb[0].mxu0
  %v150 = vpop.f32.mrb[0].mxu0
  %v151 = vadd.f32 0.0, %v150
  %v152 = vpop.f32.mrb[0].mxu0
  %153 = vmatprep.mubr.bf16.mxu0 0
  %154 = vmatmul.mubr.bf16.gmra.mrb[0].mxu0 %v62
  %v155 = vpop.f32.mrb[0].mxu0
  %v156 = vadd.f32 0.0, %v155
  %v157 = vpop.f32.mrb[0].mxu0
  %v158 = vpop.f32.mrb[0].mxu0
  %v159 = vadd.f32 0.0, %v158
  %v160 = vpop.f32.mrb[0].mxu0
  %161 = vdwg.mxu0
  %v162 = vld [vmem:[%s2] sm:$0xf]
  %v163 = vlaneseq
  %v164 = vshrl.u32 %v163, 7
  %v165 = vsub.s32 2, %v164
  %v166 = vrot.slane %v162, %v165
  %v167 = vsub.f32 %v148, %v166
  %v168 = vsub.f32 %v151, %v166
  %v169 = vsub.f32 %v156, %v166
  %v170 = vsub.f32 %v159, %v166
  %v171 = vadd.f32 %v162, 1e-05
  %v172 = vrsqrt.pop %v171
  %v174 = vrot.slane %v172, 3
  %v176 = vmul.f32 %v162, %v174
  %v177 = vlaneseq
  %v178 = vshrl.u32 %v177, 7
  %v179 = vsub.s32 0, %v178
  %v180 = vrot.slane %v176, %v179
  %v181 = vmul.f32 %v167, %v180
  %v182 = vmul.f32 %v168, %v180
  %v183 = vmul.f32 %v169, %v180
  %v184 = vmul.f32 %v170, %v180
  %v185 = vlaneseq
  %v186 = vshrl.u32 %v185, 7
  %v187 = vsub.s32 1, %v186
  %v188 = vrot.slane %v162, %v187
  %v189 = vadd.f32 %v181, %v188
  %v190 = vadd.f32 %v182, %v188
  %v191 = vadd.f32 %v183, %v188
  %v192 = vadd.f32 %v184, %v188
  %v193 = vmax.f32 %v189, 0.0
  %v194 = vmax.f32 %v190, 0.0
  %v195 = vmax.f32 %v191, 0.0
  %v196 = vmax.f32 %v192, 0.0
  %v197 = vpack.c.bf16 %v194, %v193
  %v198 = vpack.c.bf16 %v196, %v195
  %v199 = vld [vmem:[%s3] sm:$0xf]
  %v200 = vld [vmem:[%s3 + $0x4] sm:$0xf]
  %v201 = vld [vmem:[%s3 + $0x8] sm:$0xf]
  %v202 = vld [vmem:[%s3 + $0xc] sm:$0xf]
  %v203 = vld [vmem:[%s3 + $0x10] sm:$0xf]
  %v204 = vld [vmem:[%s3 + $0x14] sm:$0xf]
  %v205 = vld [vmem:[%s3 + $0x18] sm:$0xf]
  %v206 = vld [vmem:[%s3 + $0x1c] sm:$0xf]
  %v207 = vld [vmem:[%s3 + $0x20] sm:$0xf]
  %v208 = vld [vmem:[%s3 + $0x24] sm:$0xf]
  %v209 = vld [vmem:[%s3 + $0x28] sm:$0xf]
  %v210 = vld [vmem:[%s3 + $0x2c] sm:$0xf]
  %v211 = vld [vmem:[%s3 + $0x30] sm:$0xf]
  %v212 = vld [vmem:[%s3 + $0x34] sm:$0xf]
  %v213 = vld [vmem:[%s3 + $0x38] sm:$0xf]
  %v214 = vld [vmem:[%s3 + $0x3c] sm:$0xf]
  %v231 = vunpack.c.l.b16 %v199
  %v232 = vunpack.c.l.b16 %v200
  %v233 = vunpack.c.l.b16 %v201
  %v234 = vunpack.c.l.b16 %v202
  %v235 = vunpack.c.l.b16 %v203
  %v236 = vunpack.c.l.b16 %v204
  %v237 = vunpack.c.l.b16 %v205
  %v238 = vunpack.c.l.b16 %v206
  %v239 = vunpack.c.l.b16 %v207
  %v240 = vunpack.c.l.b16 %v208
  %v241 = vunpack.c.l.b16 %v209
  %v242 = vunpack.c.l.b16 %v210
  %v243 = vunpack.c.l.b16 %v211
  %v244 = vunpack.c.l.b16 %v212
  %v245 = vunpack.c.l.b16 %v213
  %v246 = vunpack.c.l.b16 %v214
  %v247 = vpack.c.b16 %v232, %v231
  %v248 = vpack.c.b16 %v234, %v233
  %v249 = vpack.c.b16 %v236, %v235
  %v250 = vpack.c.b16 %v238, %v237
  %v251 = vpack.c.b16 %v240, %v239
  %v252 = vpack.c.b16 %v242, %v241
  %v253 = vpack.c.b16 %v244, %v243
  %v254 = vpack.c.b16 %v246, %v245
  %263 = vmatprep.subr.bf16.mxu0 0
  %264 = vmatpush1.bf16.msra.mxu0 %v247
  %265 = vmatprep.subr.bf16.mxu0 0
  %266 = vmatpush1.bf16.msra.mxu0 %v248
  %267 = vmatprep.subr.bf16.mxu0 0
  %268 = vmatpush1.bf16.msra.mxu0 %v249
  %269 = vmatprep.subr.bf16.mxu0 0
  %270 = vmatpush1.bf16.msra.mxu0 %v250
  %271 = vmatprep.subr.bf16.mxu0 0
  %272 = vmatpush1.bf16.msra.mxu0 %v251
  %273 = vmatprep.subr.bf16.mxu0 0
  %274 = vmatpush1.bf16.msra.mxu0 %v252
  %275 = vmatprep.subr.bf16.mxu0 0
  %276 = vmatpush1.bf16.msra.mxu0 %v253
  %277 = vmatprep.subr.bf16.mxu0 0
  %278 = vmatpush1.bf16.msra.mxu0 %v254
  %279 = vmatprep.subr.bf16.mxu0 0
  %280 = vmatpush1.bf16.msra.mxu0 0
  %281 = vmatprep.subr.bf16.mxu0 0
  %282 = vmatpush1.bf16.msra.mxu0 0
  %283 = vmatprep.subr.bf16.mxu0 0
  %284 = vmatpush1.bf16.msra.mxu0 0
  %285 = vmatprep.subr.bf16.mxu0 0
  %286 = vmatpush1.bf16.msra.mxu0 0
  %287 = vmatprep.subr.bf16.mxu0 0
  %288 = vmatpush1.bf16.msra.mxu0 0
  %289 = vmatprep.subr.bf16.mxu0 0
  %290 = vmatpush1.bf16.msra.mxu0 0
  %291 = vmatprep.subr.bf16.mxu0 0
  %292 = vmatpush1.bf16.msra.mxu0 0
  %293 = vmatprep.subr.bf16.mxu0 0
  %294 = vmatpush1.bf16.msra.mxu0 0
  %295 = vmatprep.mubr.bf16.mxu0 0
  %296 = vmatmul.mubr.bf16.gmra.mrb[0].mxu0 %v197
  %v297 = vpop.f32.mrb[0].mxu0
  %v298 = vadd.f32 0.0, %v297
  %v299 = vpop.f32.mrb[0].mxu0
  %v300 = vpop.f32.mrb[0].mxu0
  %v301 = vadd.f32 0.0, %v300
  %v302 = vpop.f32.mrb[0].mxu0
  %303 = vmatprep.mubr.bf16.mxu0 0
  %304 = vmatmul.mubr.bf16.gmra.mrb[0].mxu0 %v198
  %v305 = vpop.f32.mrb[0].mxu0
  %v306 = vadd.f32 0.0, %v305
  %v307 = vpop.f32.mrb[0].mxu0
  %v308 = vpop.f32.mrb[0].mxu0
  %v309 = vadd.f32 0.0, %v308
  %v310 = vpop.f32.mrb[0].mxu0
  %311 = vdwg.mxu0
  %v312 = vld [vmem:[%s4] sm:$0xf]
  %v313 = vlaneseq
  %v314 = vshrl.u32 %v313, 7
  %v315 = vsub.s32 2, %v314
  %v316 = vrot.slane %v312, %v315
  %v317 = vsub.f32 %v298, %v316
  %v318 = vsub.f32 %v301, %v316
  %v319 = vsub.f32 %v306, %v316
  %v320 = vsub.f32 %v309, %v316
  %v321 = vadd.f32 %v312, 1e-05
  %v322 = vrsqrt.pop %v321
  %v324 = vrot.slane %v322, 3
  %v326 = vmul.f32 %v312, %v324
  %v327 = vlaneseq
  %v328 = vshrl.u32 %v327, 7
  %v329 = vsub.s32 0, %v328
  %v330 = vrot.slane %v326, %v329
  %v331 = vmul.f32 %v317, %v330
  %v332 = vmul.f32 %v318, %v330
  %v333 = vmul.f32 %v319, %v330
  %v334 = vmul.f32 %v320, %v330
  %v335 = vlaneseq
  %v336 = vshrl.u32 %v335, 7
  %v337 = vsub.s32 1, %v336
  %v338 = vrot.slane %v312, %v337
  %v339 = vadd.f32 %v331, %v338
  %v340 = vadd.f32 %v332, %v338
  %v341 = vadd.f32 %v333, %v338
  %v342 = vadd.f32 %v334, %v338
  %v343 = vmax.f32 %v339, 0.0
  %v344 = vmax.f32 %v340, 0.0
  %v345 = vmax.f32 %v341, 0.0
  %v346 = vmax.f32 %v342, 0.0
  %v347 = vpack.c.bf16 %v344, %v343
  %v348 = vpack.c.bf16 %v346, %v345
  %v349 = vld [vmem:[%s5] sm:$0xf]
  %v350 = vld [vmem:[%s5 + $0x4] sm:$0xf]
  %v351 = vld [vmem:[%s5 + $0x8] sm:$0xf]
  %v352 = vld [vmem:[%s5 + $0xc] sm:$0xf]
  %v353 = vld [vmem:[%s5 + $0x10] sm:$0xf]
  %v354 = vld [vmem:[%s5 + $0x14] sm:$0xf]
  %v355 = vld [vmem:[%s5 + $0x18] sm:$0xf]
  %v356 = vld [vmem:[%s5 + $0x1c] sm:$0xf]
  %v357 = vld [vmem:[%s5 + $0x20] sm:$0xf]
  %v358 = vld [vmem:[%s5 + $0x24] sm:$0xf]
  %v359 = vld [vmem:[%s5 + $0x28] sm:$0xf]
  %v360 = vld [vmem:[%s5 + $0x2c] sm:$0xf]
  %v361 = vld [vmem:[%s5 + $0x30] sm:$0xf]
  %v362 = vld [vmem:[%s5 + $0x34] sm:$0xf]
  %v363 = vld [vmem:[%s5 + $0x38] sm:$0xf]
  %v364 = vld [vmem:[%s5 + $0x3c] sm:$0xf]
  %v381 = vunpack.c.l.b16 %v349
  %v382 = vunpack.c.l.b16 %v350
  %v383 = vunpack.c.l.b16 %v351
  %v384 = vunpack.c.l.b16 %v352
  %v385 = vunpack.c.l.b16 %v353
  %v386 = vunpack.c.l.b16 %v354
  %v387 = vunpack.c.l.b16 %v355
  %v388 = vunpack.c.l.b16 %v356
  %v389 = vunpack.c.l.b16 %v357
  %v390 = vunpack.c.l.b16 %v358
  %v391 = vunpack.c.l.b16 %v359
  %v392 = vunpack.c.l.b16 %v360
  %v393 = vunpack.c.l.b16 %v361
  %v394 = vunpack.c.l.b16 %v362
  %v395 = vunpack.c.l.b16 %v363
  %v396 = vunpack.c.l.b16 %v364
  %v397 = vpack.c.b16 %v382, %v381
  %v398 = vpack.c.b16 %v384, %v383
  %v399 = vpack.c.b16 %v386, %v385
  %v400 = vpack.c.b16 %v388, %v387
  %v401 = vpack.c.b16 %v390, %v389
  %v402 = vpack.c.b16 %v392, %v391
  %v403 = vpack.c.b16 %v394, %v393
  %v404 = vpack.c.b16 %v396, %v395
  %413 = vmatprep.subr.bf16.mxu0 0
  %414 = vmatpush1.bf16.msra.mxu0 %v397
  %415 = vmatprep.subr.bf16.mxu0 0
  %416 = vmatpush1.bf16.msra.mxu0 %v398
  %417 = vmatprep.subr.bf16.mxu0 0
  %418 = vmatpush1.bf16.msra.mxu0 %v399
  %419 = vmatprep.subr.bf16.mxu0 0
  %420 = vmatpush1.bf16.msra.mxu0 %v400
  %421 = vmatprep.subr.bf16.mxu0 0
  %422 = vmatpush1.bf16.msra.mxu0 %v401
  %423 = vmatprep.subr.bf16.mxu0 0
  %424 = vmatpush1.bf16.msra.mxu0 %v402
  %425 = vmatprep.subr.bf16.mxu0 0
  %426 = vmatpush1.bf16.msra.mxu0 %v403
  %427 = vmatprep.subr.bf16.mxu0 0
  %428 = vmatpush1.bf16.msra.mxu0 %v404
  %429 = vmatprep.subr.bf16.mxu0 0
  %430 = vmatpush1.bf16.msra.mxu0 0
  %431 = vmatprep.subr.bf16.mxu0 0
  %432 = vmatpush1.bf16.msra.mxu0 0
  %433 = vmatprep.subr.bf16.mxu0 0
  %434 = vmatpush1.bf16.msra.mxu0 0
  %435 = vmatprep.subr.bf16.mxu0 0
  %436 = vmatpush1.bf16.msra.mxu0 0
  %437 = vmatprep.subr.bf16.mxu0 0
  %438 = vmatpush1.bf16.msra.mxu0 0
  %439 = vmatprep.subr.bf16.mxu0 0
  %440 = vmatpush1.bf16.msra.mxu0 0
  %441 = vmatprep.subr.bf16.mxu0 0
  %442 = vmatpush1.bf16.msra.mxu0 0
  %443 = vmatprep.subr.bf16.mxu0 0
  %444 = vmatpush1.bf16.msra.mxu0 0
  %445 = vmatprep.mubr.bf16.mxu0 0
  %446 = vmatmul.mubr.bf16.gmra.mrb[0].mxu0 %v347
  %v447 = vpop.f32.mrb[0].mxu0
  %v448 = vadd.f32 0.0, %v447
  %v449 = vpop.f32.mrb[0].mxu0
  %v450 = vpop.f32.mrb[0].mxu0
  %v451 = vadd.f32 0.0, %v450
  %v452 = vpop.f32.mrb[0].mxu0
  %453 = vmatprep.mubr.bf16.mxu0 0
  %454 = vmatmul.mubr.bf16.gmra.mrb[0].mxu0 %v348
  %v455 = vpop.f32.mrb[0].mxu0
  %v456 = vadd.f32 0.0, %v455
  %v457 = vpop.f32.mrb[0].mxu0
  %v458 = vpop.f32.mrb[0].mxu0
  %v459 = vadd.f32 0.0, %v458
  %v460 = vpop.f32.mrb[0].mxu0
  %461 = vdwg.mxu0
  %v462 = vld [vmem:[%s6] sm:$0xf]
  %v463 = vlaneseq
  %v464 = vshrl.u32 %v463, 7
  %v465 = vsub.s32 2, %v464
  %v466 = vrot.slane %v462, %v465
  %v467 = vsub.f32 %v448, %v466
  %v468 = vsub.f32 %v451, %v466
  %v469 = vsub.f32 %v456, %v466
  %v470 = vsub.f32 %v459, %v466
  %v471 = vadd.f32 %v462, 1e-05
  %v472 = vrsqrt.pop %v471
  %v474 = vrot.slane %v472, 3
  %v476 = vmul.f32 %v462, %v474
  %v477 = vlaneseq
  %v478 = vshrl.u32 %v477, 7
  %v479 = vsub.s32 0, %v478
  %v480 = vrot.slane %v476, %v479
  %v481 = vmul.f32 %v467, %v480
  %v482 = vmul.f32 %v468, %v480
  %v483 = vmul.f32 %v469, %v480
  %v484 = vmul.f32 %v470, %v480
  %v485 = vlaneseq
  %v486 = vshrl.u32 %v485, 7
  %v487 = vsub.s32 1, %v486
  %v488 = vrot.slane %v462, %v487
  %v489 = vadd.f32 %v481, %v488
  %v490 = vadd.f32 %v482, %v488
  %v491 = vadd.f32 %v483, %v488
  %v492 = vadd.f32 %v484, %v488
  %v493 = vadd.f32 %v193, %v489
  %v494 = vadd.f32 %v194, %v490
  %v495 = vadd.f32 %v195, %v491
  %v496 = vadd.f32 %v196, %v492
  %v497 = vpack.c.bf16 %v494, %v493
  %v498 = vpack.c.bf16 %v496, %v495
  %s499 = scalar_lea.vmem %s3, 64
  %v500 = vld [vmem:[%s499] sm:$0xf]
  %v501 = vld [vmem:[%s499 + $0x4] sm:$0xf]
  %v502 = vld [vmem:[%s499 + $0x8] sm:$0xf]
  %v503 = vld [vmem:[%s499 + $0xc] sm:$0xf]
  %v504 = vld [vmem:[%s499 + $0x10] sm:$0xf]
  %v505 = vld [vmem:[%s499 + $0x14] sm:$0xf]
  %v506 = vld [vmem:[%s499 + $0x18] sm:$0xf]
  %v507 = vld [vmem:[%s499 + $0x1c] sm:$0xf]
  %v508 = vld [vmem:[%s499 + $0x20] sm:$0xf]
  %v509 = vld [vmem:[%s499 + $0x24] sm:$0xf]
  %v510 = vld [vmem:[%s499 + $0x28] sm:$0xf]
  %v511 = vld [vmem:[%s499 + $0x2c] sm:$0xf]
  %v512 = vld [vmem:[%s499 + $0x30] sm:$0xf]
  %v513 = vld [vmem:[%s499 + $0x34] sm:$0xf]
  %v514 = vld [vmem:[%s499 + $0x38] sm:$0xf]
  %v515 = vld [vmem:[%s499 + $0x3c] sm:$0xf]
  %v532 = vunpack.c.l.b16 %v500
  %v533 = vunpack.c.l.b16 %v501
  %v534 = vunpack.c.l.b16 %v502
  %v535 = vunpack.c.l.b16 %v503
  %v536 = vunpack.c.l.b16 %v504
  %v537 = vunpack.c.l.b16 %v505
  %v538 = vunpack.c.l.b16 %v506
  %v539 = vunpack.c.l.b16 %v507
  %v540 = vunpack.c.l.b16 %v508
  %v541 = vunpack.c.l.b16 %v509
  %v542 = vunpack.c.l.b16 %v510
  %v543 = vunpack.c.l.b16 %v511
  %v544 = vunpack.c.l.b16 %v512
  %v545 = vunpack.c.l.b16 %v513
  %v546 = vunpack.c.l.b16 %v514
  %v547 = vunpack.c.l.b16 %v515
  %v548 = vpack.c.b16 %v533, %v532
  %v549 = vpack.c.b16 %v535, %v534
  %v550 = vpack.c.b16 %v537, %v536
  %v551 = vpack.c.b16 %v539, %v538
  %v552 = vpack.c.b16 %v541, %v540
  %v553 = vpack.c.b16 %v543, %v542
  %v554 = vpack.c.b16 %v545, %v544
  %v555 = vpack.c.b16 %v547, %v546
  %564 = vmatprep.subr.bf16.mxu0 0
  %565 = vmatpush1.bf16.msra.mxu0 %v548
  %566 = vmatprep.subr.bf16.mxu0 0
  %567 = vmatpush1.bf16.msra.mxu0 %v549
  %568 = vmatprep.subr.bf16.mxu0 0
  %569 = vmatpush1.bf16.msra.mxu0 %v550
  %570 = vmatprep.subr.bf16.mxu0 0
  %571 = vmatpush1.bf16.msra.mxu0 %v551
  %572 = vmatprep.subr.bf16.mxu0 0
  %573 = vmatpush1.bf16.msra.mxu0 %v552
  %574 = vmatprep.subr.bf16.mxu0 0
  %575 = vmatpush1.bf16.msra.mxu0 %v553
  %576 = vmatprep.subr.bf16.mxu0 0
  %577 = vmatpush1.bf16.msra.mxu0 %v554
  %578 = vmatprep.subr.bf16.mxu0 0
  %579 = vmatpush1.bf16.msra.mxu0 %v555
  %580 = vmatprep.subr.bf16.mxu0 0
  %581 = vmatpush1.bf16.msra.mxu0 0
  %582 = vmatprep.subr.bf16.mxu0 0
  %583 = vmatpush1.bf16.msra.mxu0 0
  %584 = vmatprep.subr.bf16.mxu0 0
  %585 = vmatpush1.bf16.msra.mxu0 0
  %586 = vmatprep.subr.bf16.mxu0 0
  %587 = vmatpush1.bf16.msra.mxu0 0
  %588 = vmatprep.subr.bf16.mxu0 0
  %589 = vmatpush1.bf16.msra.mxu0 0
  %590 = vmatprep.subr.bf16.mxu0 0
  %591 = vmatpush1.bf16.msra.mxu0 0
  %592 = vmatprep.subr.bf16.mxu0 0
  %593 = vmatpush1.bf16.msra.mxu0 0
  %594 = vmatprep.subr.bf16.mxu0 0
  %595 = vmatpush1.bf16.msra.mxu0 0
  %596 = vmatprep.mubr.bf16.mxu0 0
  %597 = vmatmul.mubr.bf16.gmra.mrb[0].mxu0 %v497
  %v598 = vpop.f32.mrb[0].mxu0
  %v599 = vadd.f32 0.0, %v598
  %v600 = vpop.f32.mrb[0].mxu0
  %v601 = vpop.f32.mrb[0].mxu0
  %v602 = vadd.f32 0.0, %v601
  %v603 = vpop.f32.mrb[0].mxu0
  %604 = vmatprep.mubr.bf16.mxu0 0
  %605 = vmatmul.mubr.bf16.gmra.mrb[0].mxu0 %v498
  %v606 = vpop.f32.mrb[0].mxu0
  %v607 = vadd.f32 0.0, %v606
  %v608 = vpop.f32.mrb[0].mxu0
  %v609 = vpop.f32.mrb[0].mxu0
  %v610 = vadd.f32 0.0, %v609
  %v611 = vpop.f32.mrb[0].mxu0
  %612 = vdwg.mxu0
  %s613 = scalar_lea.vmem %s4, 4
  %v614 = vld [vmem:[%s613] sm:$0xf]
  %v615 = vlaneseq
  %v616 = vshrl.u32 %v615, 7
  %v617 = vsub.s32 2, %v616
  %v618 = vrot.slane %v614, %v617
  %v619 = vsub.f32 %v599, %v618
  %v620 = vsub.f32 %v602, %v618
  %v621 = vsub.f32 %v607, %v618
  %v622 = vsub.f32 %v610, %v618
  %v623 = vadd.f32 %v614, 1e-05
  %v624 = vrsqrt.pop %v623
  %v626 = vrot.slane %v624, 3
  %v628 = vmul.f32 %v614, %v626
  %v629 = vlaneseq
  %v630 = vshrl.u32 %v629, 7
  %v631 = vsub.s32 0, %v630
  %v632 = vrot.slane %v628, %v631
  %v633 = vmul.f32 %v619, %v632
  %v634 = vmul.f32 %v620, %v632
  %v635 = vmul.f32 %v621, %v632
  %v636 = vmul.f32 %v622, %v632
  %v637 = vlaneseq
  %v638 = vshrl.u32 %v637, 7
  %v639 = vsub.s32 1, %v638
  %v640 = vrot.slane %v614, %v639
  %v641 = vadd.f32 %v633, %v640
  %v642 = vadd.f32 %v634, %v640
  %v643 = vadd.f32 %v635, %v640
  %v644 = vadd.f32 %v636, %v640
  %v645 = vmax.f32 %v641, 0.0
  %v646 = vmax.f32 %v642, 0.0
  %v647 = vmax.f32 %v643, 0.0
  %v648 = vmax.f32 %v644, 0.0
  %v649 = vpack.c.bf16 %v646, %v645
  %v650 = vpack.c.bf16 %v648, %v647
  %s651 = scalar_lea.vmem %s5, 64
  %v652 = vld [vmem:[%s651] sm:$0xf]
  %v653 = vld [vmem:[%s651 + $0x4] sm:$0xf]
  %v654 = vld [vmem:[%s651 + $0x8] sm:$0xf]
  %v655 = vld [vmem:[%s651 + $0xc] sm:$0xf]
  %v656 = vld [vmem:[%s651 + $0x10] sm:$0xf]
  %v657 = vld [vmem:[%s651 + $0x14] sm:$0xf]
  %v658 = vld [vmem:[%s651 + $0x18] sm:$0xf]
  %v659 = vld [vmem:[%s651 + $0x1c] sm:$0xf]
  %v660 = vld [vmem:[%s651 + $0x20] sm:$0xf]
  %v661 = vld [vmem:[%s651 + $0x24] sm:$0xf]
  %v662 = vld [vmem:[%s651 + $0x28] sm:$0xf]
  %v663 = vld [vmem:[%s651 + $0x2c] sm:$0xf]
  %v664 = vld [vmem:[%s651 + $0x30] sm:$0xf]
  %v665 = vld [vmem:[%s651 + $0x34] sm:$0xf]
  %v666 = vld [vmem:[%s651 + $0x38] sm:$0xf]
  %v667 = vld [vmem:[%s651 + $0x3c] sm:$0xf]
  %v684 = vunpack.c.l.b16 %v652
  %v685 = vunpack.c.l.b16 %v653
  %v686 = vunpack.c.l.b16 %v654
  %v687 = vunpack.c.l.b16 %v655
  %v688 = vunpack.c.l.b16 %v656
  %v689 = vunpack.c.l.b16 %v657
  %v690 = vunpack.c.l.b16 %v658
  %v691 = vunpack.c.l.b16 %v659
  %v692 = vunpack.c.l.b16 %v660
  %v693 = vunpack.c.l.b16 %v661
  %v694 = vunpack.c.l.b16 %v662
  %v695 = vunpack.c.l.b16 %v663
  %v696 = vunpack.c.l.b16 %v664
  %v697 = vunpack.c.l.b16 %v665
  %v698 = vunpack.c.l.b16 %v666
  %v699 = vunpack.c.l.b16 %v667
  %v700 = vpack.c.b16 %v685, %v684
  %v701 = vpack.c.b16 %v687, %v686
  %v702 = vpack.c.b16 %v689, %v688
  %v703 = vpack.c.b16 %v691, %v690
  %v704 = vpack.c.b16 %v693, %v692
  %v705 = vpack.c.b16 %v695, %v694
  %v706 = vpack.c.b16 %v697, %v696
  %v707 = vpack.c.b16 %v699, %v698
  %716 = vmatprep.subr.bf16.mxu0 0
  %717 = vmatpush1.bf16.msra.mxu0 %v700
  %718 = vmatprep.subr.bf16.mxu0 0
  %719 = vmatpush1.bf16.msra.mxu0 %v701
  %720 = vmatprep.subr.bf16.mxu0 0
  %721 = vmatpush1.bf16.msra.mxu0 %v702
  %722 = vmatprep.subr.bf16.mxu0 0
  %723 = vmatpush1.bf16.msra.mxu0 %v703
  %724 = vmatprep.subr.bf16.mxu0 0
  %725 = vmatpush1.bf16.msra.mxu0 %v704
  %726 = vmatprep.subr.bf16.mxu0 0
  %727 = vmatpush1.bf16.msra.mxu0 %v705
  %728 = vmatprep.subr.bf16.mxu0 0
  %729 = vmatpush1.bf16.msra.mxu0 %v706
  %730 = vmatprep.subr.bf16.mxu0 0
  %731 = vmatpush1.bf16.msra.mxu0 %v707
  %732 = vmatprep.subr.bf16.mxu0 0
  %733 = vmatpush1.bf16.msra.mxu0 0
  %734 = vmatprep.subr.bf16.mxu0 0
  %735 = vmatpush1.bf16.msra.mxu0 0
  %736 = vmatprep.subr.bf16.mxu0 0
  %737 = vmatpush1.bf16.msra.mxu0 0
  %738 = vmatprep.subr.bf16.mxu0 0
  %739 = vmatpush1.bf16.msra.mxu0 0
  %740 = vmatprep.subr.bf16.mxu0 0
  %741 = vmatpush1.bf16.msra.mxu0 0
  %742 = vmatprep.subr.bf16.mxu0 0
  %743 = vmatpush1.bf16.msra.mxu0 0
  %744 = vmatprep.subr.bf16.mxu0 0
  %745 = vmatpush1.bf16.msra.mxu0 0
  %746 = vmatprep.subr.bf16.mxu0 0
  %747 = vmatpush1.bf16.msra.mxu0 0
  %748 = vmatprep.mubr.bf16.mxu0 0
  %749 = vmatmul.mubr.bf16.gmra.mrb[0].mxu0 %v649
  %v750 = vpop.f32.mrb[0].mxu0
  %v751 = vadd.f32 0.0, %v750
  %v752 = vpop.f32.mrb[0].mxu0
  %v753 = vpop.f32.mrb[0].mxu0
  %v754 = vadd.f32 0.0, %v753
  %v755 = vpop.f32.mrb[0].mxu0
  %756 = vmatprep.mubr.bf16.mxu0 0
  %757 = vmatmul.mubr.bf16.gmra.mrb[0].mxu0 %v650
  %v758 = vpop.f32.mrb[0].mxu0
  %v759 = vadd.f32 0.0, %v758
  %v760 = vpop.f32.mrb[0].mxu0
  %v761 = vpop.f32.mrb[0].mxu0
  %v762 = vadd.f32 0.0, %v761
  %v763 = vpop.f32.mrb[0].mxu0
  %764 = vdwg.mxu0
  %s765 = scalar_lea.vmem %s6, 4
  %v766 = vld [vmem:[%s765] sm:$0xf]
  %v767 = vlaneseq
  %v768 = vshrl.u32 %v767, 7
  %v769 = vsub.s32 2, %v768
  %v770 = vrot.slane %v766, %v769
  %v771 = vsub.f32 %v751, %v770
  %v772 = vsub.f32 %v754, %v770
  %v773 = vsub.f32 %v759, %v770
  %v774 = vsub.f32 %v762, %v770
  %v775 = vadd.f32 %v766, 1e-05
  %v776 = vrsqrt.pop %v775
  %v778 = vrot.slane %v776, 3
  %v780 = vmul.f32 %v766, %v778
  %v781 = vlaneseq
  %v782 = vshrl.u32 %v781, 7
  %v783 = vsub.s32 0, %v782
  %v784 = vrot.slane %v780, %v783
  %v785 = vmul.f32 %v771, %v784
  %v786 = vmul.f32 %v772, %v784
  %v787 = vmul.f32 %v773, %v784
  %v788 = vmul.f32 %v774, %v784
  %v789 = vlaneseq
  %v790 = vshrl.u32 %v789, 7
  %v791 = vsub.s32 1, %v790
  %v792 = vrot.slane %v766, %v791
  %v793 = vadd.f32 %v785, %v792
  %v794 = vadd.f32 %v786, %v792
  %v795 = vadd.f32 %v787, %v792
  %v796 = vadd.f32 %v788, %v792
  %v797 = vadd.f32 %v493, %v793
  %v798 = vadd.f32 %v494, %v794
  %v799 = vadd.f32 %v495, %v795
  %v800 = vadd.f32 %v496, %v796
  %v801 = vpack.c.bf16 %v798, %v797
  %v802 = vpack.c.bf16 %v800, %v799
  %v803 = vld [vmem:[%s7] sm:$0xf]
  %v804 = vld [vmem:[%s7 + $0x4] sm:$0xf]
  %v805 = vld [vmem:[%s7 + $0x8] sm:$0xf]
  %v806 = vld [vmem:[%s7 + $0xc] sm:$0xf]
  %v807 = vld [vmem:[%s7 + $0x10] sm:$0xf]
  %v808 = vld [vmem:[%s7 + $0x14] sm:$0xf]
  %v809 = vld [vmem:[%s7 + $0x18] sm:$0xf]
  %v810 = vld [vmem:[%s7 + $0x1c] sm:$0xf]
  %v811 = vld [vmem:[%s7 + $0x20] sm:$0xf]
  %v812 = vld [vmem:[%s7 + $0x24] sm:$0xf]
  %v813 = vld [vmem:[%s7 + $0x28] sm:$0xf]
  %v814 = vld [vmem:[%s7 + $0x2c] sm:$0xf]
  %v815 = vld [vmem:[%s7 + $0x30] sm:$0xf]
  %v816 = vld [vmem:[%s7 + $0x34] sm:$0xf]
  %v817 = vld [vmem:[%s7 + $0x38] sm:$0xf]
  %v818 = vld [vmem:[%s7 + $0x3c] sm:$0xf]
  %v819 = vld [vmem:[%s8] sm:$0x1]
  %v821 = vlaneseq
  %v822 = vshrl.u32 %v821, 7
  %v823 = vsub.s32 0, %v822
  %v824 = vrot.slane %v819, %v823
  %v842 = vunpack.c.l.b16 %v803
  %v843 = vunpack.c.l.b16 %v804
  %v844 = vunpack.c.l.b16 %v805
  %v845 = vunpack.c.l.b16 %v806
  %v846 = vunpack.c.l.b16 %v807
  %v847 = vunpack.c.l.b16 %v808
  %v848 = vunpack.c.l.b16 %v809
  %v849 = vunpack.c.l.b16 %v810
  %v850 = vunpack.c.l.b16 %v811
  %v851 = vunpack.c.l.b16 %v812
  %v852 = vunpack.c.l.b16 %v813
  %v853 = vunpack.c.l.b16 %v814
  %v854 = vunpack.c.l.b16 %v815
  %v855 = vunpack.c.l.b16 %v816
  %v856 = vunpack.c.l.b16 %v817
  %v857 = vunpack.c.l.b16 %v818
  %v858 = vpack.c.b16 %v843, %v842
  %v859 = vpack.c.b16 %v845, %v844
  %v860 = vpack.c.b16 %v847, %v846
  %v861 = vpack.c.b16 %v849, %v848
  %v862 = vpack.c.b16 %v851, %v850
  %v863 = vpack.c.b16 %v853, %v852
  %v864 = vpack.c.b16 %v855, %v854
  %v865 = vpack.c.b16 %v857, %v856
  %874 = vmatprep.subr.bf16.mxu0 0
  %875 = vmatpush1.bf16.msra.mxu0 %v858
  %876 = vmatprep.subr.bf16.mxu0 0
  %877 = vmatpush1.bf16.msra.mxu0 %v859
  %878 = vmatprep.subr.bf16.mxu0 0
  %879 = vmatpush1.bf16.msra.mxu0 %v860
  %880 = vmatprep.subr.bf16.mxu0 0
  %881 = vmatpush1.bf16.msra.mxu0 %v861
  %882 = vmatprep.subr.bf16.mxu0 0
  %883 = vmatpush1.bf16.msra.mxu0 %v862
  %884 = vmatprep.subr.bf16.mxu0 0
  %885 = vmatpush1.bf16.msra.mxu0 %v863
  %886 = vmatprep.subr.bf16.mxu0 0
  %887 = vmatpush1.bf16.msra.mxu0 %v864
  %888 = vmatprep.subr.bf16.mxu0 0
  %889 = vmatpush1.bf16.msra.mxu0 %v865
  %890 = vmatprep.subr.bf16.mxu0 0
  %891 = vmatpush1.bf16.msra.mxu0 0
  %892 = vmatprep.subr.bf16.mxu0 0
  %893 = vmatpush1.bf16.msra.mxu0 0
  %894 = vmatprep.subr.bf16.mxu0 0
  %895 = vmatpush1.bf16.msra.mxu0 0
  %896 = vmatprep.subr.bf16.mxu0 0
  %897 = vmatpush1.bf16.msra.mxu0 0
  %898 = vmatprep.subr.bf16.mxu0 0
  %899 = vmatpush1.bf16.msra.mxu0 0
  %900 = vmatprep.subr.bf16.mxu0 0
  %901 = vmatpush1.bf16.msra.mxu0 0
  %902 = vmatprep.subr.bf16.mxu0 0
  %903 = vmatpush1.bf16.msra.mxu0 0
  %904 = vmatprep.subr.bf16.mxu0 0
  %905 = vmatpush1.bf16.msra.mxu0 0
  %906 = vmatprep.mubr.bf16.mxu0 0
  %907 = vmatmul.mubr.bf16.gmra.mrb[0].mxu0 %v801
  %v908 = vpop.f32.mrb[0].mxu0
  %v909 = vadd.f32 %v824, %v908
  %v910 = vpop.f32.mrb[0].mxu0
  %v911 = vpop.f32.mrb[0].mxu0
  %v912 = vadd.f32 %v824, %v911
  %v913 = vpop.f32.mrb[0].mxu0
  %914 = vmatprep.mubr.bf16.mxu0 0
  %915 = vmatmul.mubr.bf16.gmra.mrb[0].mxu0 %v802
  %v916 = vpop.f32.mrb[0].mxu0
  %v917 = vadd.f32 %v824, %v916
  %v918 = vpop.f32.mrb[0].mxu0
  %v919 = vpop.f32.mrb[0].mxu0
  %v920 = vadd.f32 %v824, %v919
  %v921 = vpop.f32.mrb[0].mxu0
  %922 = vdwg.mxu0
  %923 = vst [vmem:[%s9] sm:$0xff] %v909
  %924 = vst [vmem:[%s9 + $0x8] sm:$0xff] %v912
  %925 = vst [vmem:[%s9 + $0x10] sm:$0xff] %v917
  %926 = vst [vmem:[%s9 + $0x18] sm:$0xff] %v920
  // Predicated region
  $region38: #{upsample_network_forward.3} parent=0 // pred_check
    _
  $region39: #{upsample_network_forward.3} parent=0 // pred_check_branch
    %928 = sbr.rel (0) target = $region41
  $region40: #{upsample_network_forward.3} parent=0 // pred_region
    _
  $region41: #{upsample_network_forward.3} parent=0 // pred_fallthru
    _
  // Predicated region
  $region42: #{upsample_network_forward.3} parent=0 // pred_check
    _
  $region43: #{upsample_network_forward.3} parent=0 // pred_check_branch
    %930 = sbr.rel (0) target = $region45
  $region44: #{upsample_network_forward.3} parent=0 // pred_region
    _
  $region45: #{upsample_network_forward.3} parent=0 // pred_fallthru
    _

</llo_original>
